<compile_context>
chip_gen: v7x
topology: tpu7x:2x2x1
jax: 0.10.0
libtpu: 0.0.40
codegen_flags: <defaults>
</compile_context>

<pallas_src>
import functools

import jax
import jax.numpy as jnp
from jax.experimental import pallas as pl
from jax.experimental.pallas import tpu as pltpu


def _dice_kernel(target_ref, logits_ref, out_ref, inter_acc, union_acc, *,
                 num_classes, hw_valid, smooth):
    b = pl.program_id(0)
    j = pl.program_id(1)

    @pl.when((b == 0) & (j == 0))
    def _init():
        inter_acc[...] = jnp.zeros_like(inter_acc)
        union_acc[...] = jnp.zeros_like(union_acc)

    logits = logits_ref[0]            # (C, tn) f32
    tgt = target_ref[0]               # (1, tn) i32
    tn = logits.shape[1]

    # Validity mask for the (possibly ragged) last pixel tile of this image.
    col = jax.lax.broadcasted_iota(jnp.int32, (1, tn), 1) + j * tn
    valid = col < hw_valid                                    # (1, tn) bool
    validf = valid.astype(jnp.float32)

    # Zero invalid logits before exp so OOB-padded garbage cannot produce
    # inf/NaN; the resulting uniform softmax columns are masked out below.
    logits = jnp.where(valid, logits, 0.0)

    # Per-pixel softmax over the class (sublane) axis.
    m = jnp.max(logits, axis=0, keepdims=True)                # (1, tn)
    e = jnp.exp(logits - m)                                   # (C, tn)  EUP
    probs = e / jnp.sum(e, axis=0, keepdims=True)             # (C, tn)
    probs = probs * validf                                    # zero padded cols

    # One-hot target: (target == class_idx), classes along the sublane axis.
    class_ids = jax.lax.broadcasted_iota(jnp.int32, (num_classes, tn), 0)
    onehot = (tgt == class_ids).astype(jnp.float32) * validf  # (C, tn)

    # Per-class partial reductions over the pixel (lane) axis -> XLU.
    inter_acc[...] += jnp.sum(probs * onehot, axis=1, keepdims=True)    # (C, 1)
    union_acc[...] += (jnp.sum(probs, axis=1, keepdims=True) +
                       jnp.sum(onehot, axis=1, keepdims=True))          # (C, 1)

    @pl.when((b == pl.num_programs(0) - 1) & (j == pl.num_programs(1) - 1))
    def _finalize():
        dice = (2.0 * inter_acc[...] + smooth) / (union_acc[...] + smooth)
        loss = jnp.sum(1.0 - dice, axis=0, keepdims=True) / num_classes  # (1,1)
        out_ref[...] = loss


def dice_loss_multiclass(target, logits, *, block_n=2048):
    """target: (B, H, W) int class ids; logits: (B, C, H, W) float.
    Returns the scalar multiclass soft-Dice loss (f32), matching
    DiceLossMulticlass(num_classes=C).forward(target, logits)."""
    B, C, H, W = logits.shape
    assert target.shape == (B, H, W)
    hw = H * W

    # Free, contiguous reshapes (no transpose / no padding copies in HBM).
    x = logits.reshape(B, C, hw).astype(jnp.float32)
    t = target.reshape(B, 1, hw).astype(jnp.int32)

    # Lane-tile width: multiple of 128, no larger than needed to cover H*W.
    block_n = min(block_n, pl.cdiv(hw, 128) * 128)
    grid = (B, pl.cdiv(hw, block_n))

    kernel = functools.partial(_dice_kernel, num_classes=C, hw_valid=hw,
                               smooth=1e-8)

    out = pl.pallas_call(
        kernel,
        out_shape=jax.ShapeDtypeStruct((1, 1), jnp.float32),
        grid_spec=pltpu.PrefetchScalarGridSpec(
            num_scalar_prefetch=0,
            grid=grid,
            in_specs=[pl.BlockSpec((1, 1, block_n), lambda b, j: (b, 0, j)),
                      pl.BlockSpec((1, C, block_n), lambda b, j: (b, 0, j))],
            out_specs=pl.BlockSpec((1, 1), lambda b, j: (0, 0)),
            scratch_shapes=[pltpu.VMEM((C, 1), jnp.float32),
                            pltpu.VMEM((C, 1), jnp.float32)],
        ),
        compiler_params=pltpu.CompilerParams(
            dimension_semantics=("arbitrary", "arbitrary")),
    )(t, x)
    return out[0, 0]


def _reference(target, logits):
    # Pure-JAX mirror of the PyTorch forward.
    B, C, H, W = logits.shape
    probs = jax.nn.softmax(logits.astype(jnp.float32), axis=1)
    smooth = 1e-8
    loss = 0.0
    for c in range(C):
        pc = probs[:, c, :, :]
        tc = (target == c).astype(jnp.float32)
        inter = jnp.sum(pc * tc)
        union = jnp.sum(pc) + jnp.sum(tc)
        dice = (2.0 * inter + smooth) / (union + smooth)
        loss = loss + (1.0 - dice)
    return loss / C


if __name__ == "__main__":
    key = jax.random.PRNGKey(0)
    ok = True

    # Case 1: shapes matching the module's intended use (H*W multiple of 128).
    k1, k2, k3, k4 = jax.random.split(key, 4)
    B, C, H, W = 2, 4, 16, 16
    logits = jax.random.normal(k1, (B, C, H, W), dtype=jnp.float32)
    target = jax.random.randint(k2, (B, H, W), 0, C, dtype=jnp.int32)
    out = jax.block_until_ready(dice_loss_multiclass(target, logits))
    ref = jax.block_until_ready(_reference(target, logits))
    if abs(float(out) - float(ref)) > 1e-5 * max(1.0, abs(float(ref))):
        ok = False
        print(f"MISMATCH case1: {float(out)} vs {float(ref)}")

    # Case 2: ragged pixel count (exercises the in-kernel validity mask).
    B2, C2, H2, W2 = 2, 5, 7, 9
    logits2 = jax.random.normal(k3, (B2, C2, H2, W2), dtype=jnp.float32)
    target2 = jax.random.randint(k4, (B2, H2, W2), 0, C2, dtype=jnp.int32)
    out2 = jax.block_until_ready(dice_loss_multiclass(target2, logits2))
    ref2 = jax.block_until_ready(_reference(target2, logits2))
    if abs(float(out2) - float(ref2)) > 1e-5 * max(1.0, abs(float(ref2))):
        ok = False
        print(f"MISMATCH case2: {float(out2)} vs {float(ref2)}")

    if ok:
        print("KERNEL_OK")
</pallas_src>

<mosaic_0001>
module attributes {stable_mosaic.version = 11 : i64} {
  func.func @_dice_kernel(%arg0: i32, %arg1: i32, %arg2: memref<1x1x256xi32, #tpu.memory_space<vmem>>, %arg3: memref<1x4x256xf32, #tpu.memory_space<vmem>>, %arg4: memref<1x1xf32, #tpu.memory_space<vmem>>, %arg5: memref<4x1xf32, #tpu.memory_space<vmem>>, %arg6: memref<4x1xf32, #tpu.memory_space<vmem>>) attributes {dimension_semantics = [#tpu.dimension_semantics<arbitrary>, #tpu.dimension_semantics<arbitrary>], iteration_bounds = array<i64: 2, 1>, scalar_prefetch = 0 : i64, scratch_operands = 2 : i64, tpu.core_type = #tpu.core_type<tc>, window_params = [{transform_indices = @transform_0, window_bounds = array<i64: 1, 1, 256>}, {transform_indices = @transform_1, window_bounds = array<i64: 1, 4, 256>}, {pipeline_mode = #tpu.pipeline_mode<synchronous>, transform_indices = @transform_2, window_bounds = array<i64: 1, 1>}]} {
    %c0_i32 = arith.constant 0 : i32
    %0 = arith.cmpi eq, %arg0, %c0_i32 : i32
    %c0_i32_0 = arith.constant 0 : i32
    %1 = arith.cmpi eq, %arg1, %c0_i32_0 : i32
    %2 = arith.andi %0, %1 : i1
    %3 = arith.extui %2 : i1 to i32
    %c0_i32_1 = arith.constant 0 : i32
    %4 = arith.cmpi ne, %3, %c0_i32_1 : i32
    scf.if %4 {
      %cst_23 = arith.constant 0.000000e+00 : f32
      %58 = vector.broadcast %cst_23 : f32 to vector<4x1xf32>
      %c0_24 = arith.constant 0 : index
      %c0_25 = arith.constant 0 : index
      %59 = vector.load %arg5[%c0_24, %c0_25] : memref<4x1xf32, #tpu.memory_space<vmem>>, vector<4x1xf32>
      tpu.vector_store %arg5[%c0_24, %c0_25], %58 {strides = array<i32>} : memref<4x1xf32, #tpu.memory_space<vmem>>, vector<4x1xf32>,
      %cst_26 = arith.constant 0.000000e+00 : f32
      %60 = vector.broadcast %cst_26 : f32 to vector<4x1xf32>
      %c0_27 = arith.constant 0 : index
      %c0_28 = arith.constant 0 : index
      %61 = vector.load %arg6[%c0_27, %c0_28] : memref<4x1xf32, #tpu.memory_space<vmem>>, vector<4x1xf32>
      tpu.vector_store %arg6[%c0_27, %c0_28], %60 {strides = array<i32>} : memref<4x1xf32, #tpu.memory_space<vmem>>, vector<4x1xf32>,
    } else {
    }
    %c0 = arith.constant 0 : index
    %c0_2 = arith.constant 0 : index
    %c0_3 = arith.constant 0 : index
    %5 = vector.load %arg3[%c0, %c0_2, %c0_3] : memref<1x4x256xf32, #tpu.memory_space<vmem>>, vector<1x4x256xf32>
    %6 = vector.shape_cast %5 : vector<1x4x256xf32> to vector<4x256xf32>
    %c0_4 = arith.constant 0 : index
    %c0_5 = arith.constant 0 : index
    %c0_6 = arith.constant 0 : index
    %7 = vector.load %arg2[%c0_4, %c0_5, %c0_6] : memref<1x1x256xi32, #tpu.memory_space<vmem>>, vector<1x1x256xi32>
    %8 = vector.shape_cast %7 : vector<1x1x256xi32> to vector<1x256xi32>
    %9 = tpu.iota {dimensions = array<i32: 1>} : vector<1x256xi32>
    %c256_i32 = arith.constant 256 : i32
    %10 = arith.muli %arg1, %c256_i32 : i32
    %11 = vector.broadcast %10 : i32 to vector<1x256xi32>
    %12 = arith.addi %9, %11 : vector<1x256xi32>
    %c256_i32_7 = arith.constant 256 : i32
    %13 = vector.broadcast %c256_i32_7 : i32 to vector<1x256xi32>
    %14 = arith.cmpi slt, %12, %13 : vector<1x256xi32>
    %15 = arith.extui %14 : vector<1x256xi1> to vector<1x256xi32>
    %16 = arith.sitofp %15 : vector<1x256xi32> to vector<1x256xf32>
    %cst = arith.constant 0.000000e+00 : f32
    %17 = vector.shape_cast %14 : vector<1x256xi1> to vector<1x256xi1>
    %18 = vector.broadcast %17 : vector<1x256xi1> to vector<4x256xi1>
    %19 = vector.broadcast %cst : f32 to vector<4x256xf32>
    %20 = arith.select %18, %6, %19 : vector<4x256xi1>, vector<4x256xf32>
    %cst_8 = arith.constant dense<0xFF800000> : vector<256xf32>
    %21 = vector.multi_reduction <maximumf>, %20, %cst_8 [0] : vector<4x256xf32> to vector<256xf32>
    %22 = vector.shape_cast %21 : vector<256xf32> to vector<1x256xf32>
    %23 = vector.broadcast %22 : vector<1x256xf32> to vector<4x256xf32>
    %24 = arith.subf %20, %23 : vector<4x256xf32>
    %25 = math.exp %24 : vector<4x256xf32>
    %cst_9 = arith.constant dense<0.000000e+00> : vector<256xf32>
    %26 = vector.multi_reduction <add>, %25, %cst_9 [0] : vector<4x256xf32> to vector<256xf32>
    %27 = vector.shape_cast %26 : vector<256xf32> to vector<1x256xf32>
    %28 = vector.broadcast %27 : vector<1x256xf32> to vector<4x256xf32>
    %29 = arith.divf %25, %28 : vector<4x256xf32>
    %30 = vector.broadcast %16 : vector<1x256xf32> to vector<4x256xf32>
    %31 = arith.mulf %29, %30 : vector<4x256xf32>
    %32 = tpu.iota {dimensions = array<i32: 0>} : vector<4x256xi32>
    %33 = vector.broadcast %8 : vector<1x256xi32> to vector<4x256xi32>
    %34 = arith.cmpi eq, %33, %32 : vector<4x256xi32>
    %35 = arith.extui %34 : vector<4x256xi1> to vector<4x256xi32>
    %36 = arith.sitofp %35 : vector<4x256xi32> to vector<4x256xf32>
    %37 = vector.broadcast %16 : vector<1x256xf32> to vector<4x256xf32>
    %38 = arith.mulf %36, %37 : vector<4x256xf32>
    %c0_10 = arith.constant 0 : index
    %c0_11 = arith.constant 0 : index
    %39 = vector.load %arg5[%c0_10, %c0_11] : memref<4x1xf32, #tpu.memory_space<vmem>>, vector<4x1xf32>
    %40 = arith.mulf %31, %38 : vector<4x256xf32>
    %cst_12 = arith.constant dense<0.000000e+00> : vector<4xf32>
    %41 = vector.multi_reduction <add>, %40, %cst_12 [1] : vector<4x256xf32> to vector<4xf32>
    %42 = vector.shape_cast %41 : vector<4xf32> to vector<4x1xf32>
    %43 = arith.addf %39, %42 : vector<4x1xf32>
    %c0_13 = arith.constant 0 : index
    %c0_14 = arith.constant 0 : index
    %44 = vector.load %arg5[%c0_13, %c0_14] : memref<4x1xf32, #tpu.memory_space<vmem>>, vector<4x1xf32>
    tpu.vector_store %arg5[%c0_13, %c0_14], %43 {strides = array<i32>} : memref<4x1xf32, #tpu.memory_space<vmem>>, vector<4x1xf32>,
    %c0_15 = arith.constant 0 : index
    %c0_16 = arith.constant 0 : index
    %45 = vector.load %arg6[%c0_15, %c0_16] : memref<4x1xf32, #tpu.memory_space<vmem>>, vector<4x1xf32>
    %cst_17 = arith.constant dense<0.000000e+00> : vector<4xf32>
    %46 = vector.multi_reduction <add>, %31, %cst_17 [1] : vector<4x256xf32> to vector<4xf32>
    %47 = vector.shape_cast %46 : vector<4xf32> to vector<4x1xf32>
    %cst_18 = arith.constant dense<0.000000e+00> : vector<4xf32>
    %48 = vector.multi_reduction <add>, %38, %cst_18 [1] : vector<4x256xf32> to vector<4xf32>
    %49 = vector.shape_cast %48 : vector<4xf32> to vector<4x1xf32>
    %50 = arith.addf %47, %49 : vector<4x1xf32>
    %51 = arith.addf %45, %50 : vector<4x1xf32>
    %c0_19 = arith.constant 0 : index
    %c0_20 = arith.constant 0 : index
    %52 = vector.load %arg6[%c0_19, %c0_20] : memref<4x1xf32, #tpu.memory_space<vmem>>, vector<4x1xf32>
    tpu.vector_store %arg6[%c0_19, %c0_20], %51 {strides = array<i32>} : memref<4x1xf32, #tpu.memory_space<vmem>>, vector<4x1xf32>,
    %c1_i32 = arith.constant 1 : i32
    %53 = arith.cmpi eq, %arg0, %c1_i32 : i32
    %c0_i32_21 = arith.constant 0 : i32
    %54 = arith.cmpi eq, %arg1, %c0_i32_21 : i32
    %55 = arith.andi %53, %54 : i1
    %56 = arith.extui %55 : i1 to i32
    %c0_i32_22 = arith.constant 0 : i32
    %57 = arith.cmpi ne, %56, %c0_i32_22 : i32
    scf.if %57 {
      %c0_23 = arith.constant 0 : index
      %c0_24 = arith.constant 0 : index
      %58 = vector.load %arg5[%c0_23, %c0_24] : memref<4x1xf32, #tpu.memory_space<vmem>>, vector<4x1xf32>
      %cst_25 = arith.constant 2.000000e+00 : f32
      %59 = vector.broadcast %cst_25 : f32 to vector<4x1xf32>
      %60 = arith.mulf %59, %58 : vector<4x1xf32>
      %cst_26 = arith.constant 9.99999993E-9 : f32
      %61 = vector.broadcast %cst_26 : f32 to vector<4x1xf32>
      %62 = arith.addf %60, %61 : vector<4x1xf32>
      %c0_27 = arith.constant 0 : index
      %c0_28 = arith.constant 0 : index
      %63 = vector.load %arg6[%c0_27, %c0_28] : memref<4x1xf32, #tpu.memory_space<vmem>>, vector<4x1xf32>
      %cst_29 = arith.constant 9.99999993E-9 : f32
      %64 = vector.broadcast %cst_29 : f32 to vector<4x1xf32>
      %65 = arith.addf %63, %64 : vector<4x1xf32>
      %66 = arith.divf %62, %65 : vector<4x1xf32>
      %cst_30 = arith.constant 1.000000e+00 : f32
      %67 = vector.broadcast %cst_30 : f32 to vector<4x1xf32>
      %68 = arith.subf %67, %66 : vector<4x1xf32>
      %cst_31 = arith.constant dense<0.000000e+00> : vector<1xf32>
      %69 = vector.multi_reduction <add>, %68, %cst_31 [0] : vector<4x1xf32> to vector<1xf32>
      %70 = vector.shape_cast %69 : vector<1xf32> to vector<1x1xf32>
      %cst_32 = arith.constant 4.000000e+00 : f32
      %71 = vector.broadcast %cst_32 : f32 to vector<1x1xf32>
      %72 = arith.divf %70, %71 : vector<1x1xf32>
      %c0_33 = arith.constant 0 : index
      %c0_34 = arith.constant 0 : index
      %73 = vector.load %arg4[%c0_33, %c0_34] : memref<1x1xf32, #tpu.memory_space<vmem>>, vector<1x1xf32>
      tpu.vector_store %arg4[%c0_33, %c0_34], %72 {strides = array<i32>} : memref<1x1xf32, #tpu.memory_space<vmem>>, vector<1x1xf32>,
    } else {
    }
    return
  }
  func.func @transform_0(%arg0: i32, %arg1: i32) -> (i32, i32, i32) {
    %c0_i32 = arith.constant 0 : i32
    %c0_i32_0 = arith.constant 0 : i32
    return %arg0, %c0_i32, %arg1 : i32, i32, i32
  }
  func.func @transform_1(%arg0: i32, %arg1: i32) -> (i32, i32, i32) {
    %c0_i32 = arith.constant 0 : i32
    %c0_i32_0 = arith.constant 0 : i32
    return %arg0, %c0_i32, %arg1 : i32, i32, i32
  }
  func.func @transform_2(%arg0: i32, %arg1: i32) -> (i32, i32) {
    %c0_i32 = arith.constant 0 : i32
    %c0_i32_0 = arith.constant 0 : i32
    %c0_i32_1 = arith.constant 0 : i32
    return %c0_i32, %c0_i32_0 : i32, i32
  }
}

</mosaic_0001>

<llo_original>
// kernel: tpu_custom_call.1
$region0: #{tpu_custom_call.1}
  #allocation0 [shape = 'u32[]', space=smem, size = 0x4, offset = 0x4, fixed_abs, tag = 'smem constant byte address 0x4 - core index']
  #allocation1 [shape = 'u32[144,128]{1,0:T(1,128)}', space=vmem, size = 0x12000, scoped, tag = 'internal scratch']
  #allocation2 [shape = 'f32[4,1]{1,0:T(4,128)}', space=vmem, size = 0x800, scoped, tag = 'scratch operand']
  #allocation3 [shape = 'f32[4,1]{1,0:T(4,128)}', space=vmem, size = 0x800, scoped, tag = 'scratch operand']
  %s0 = inlined_call_operand.hbm [shape: s32[2,1,256], index: 0, kind: input, shape index: {}]
  %s1 = inlined_call_operand.hbm [shape: f32[2,4,256], index: 1, kind: input, shape index: {}]
  %s2 = inlined_call_operand.hbm [shape: f32[1,1], index: 2, kind: output, shape index: {}]
  %s3 = sld [smem:[#allocation0]]
  $region57: #{tpu_custom_call.1} parent=0
    _
  %s5 = ssub.s32 1, %s3
  %s6 = scalar_select 0, %s5, %s3
  $region1: #{tpu_custom_call.1} parent=0
    #allocation4 [shape = 'u8[2048]{0}', space=vmem, size = 0x800, scoped, tag = 'input window, operand 0']
    #allocation5 [shape = 's32[2]{0}', space=sflag, size = 0x8, scoped, tag = 'scoped memory for tpu_custom_call.1']
    #allocation6 [shape = 's32[2]{0}', space=sflag, size = 0x8, scoped, tag = 'scoped memory for tpu_custom_call.1']
    #allocation7 [shape = 'u8[8192]{0}', space=vmem, size = 0x2000, scoped, tag = 'input window, operand 1']
    #allocation8 [shape = 's32[2]{0}', space=sflag, size = 0x8, scoped, tag = 'scoped memory for tpu_custom_call.1']
    #allocation9 [shape = 'u8[512]{0}', space=vmem, size = 0x400, scoped, tag = 'output window, operand 0, single buffered']
    %7 = vsyncpa [#allocation5], 0
    %s8 = scalar_lea.sflag [#allocation5], 1
    %9 = vsyncpa %s8, 0
    %10 = vsyncpa [#allocation8], 0
    %s11 = scalar_lea.sflag [#allocation8], 1
    %12 = vsyncpa %s11, 0
    %13 = vsyncpa [#allocation6], 0
    loop: start=0, step=1, limit=4
    $region2: #{tpu_custom_call.1} parent=1 // loop_pre_header
      _
    $region3: #{tpu_custom_call.1} parent=1 // loop_header
      %s15 = sphi 0, %s19
      %p16 = scmp.ge.s32.totalorder %s15, 4
      %s22 = sphi 0, %s34
      %s23 = sphi 0, %s30
      %s24 = sphi 0, %s22
      %s25 = sphi 0, %s23
      %s26 = sphi 0, %s24
      %s27 = sphi 0, %s25
      %s39 = sphi 0, %s41
      %s42 = sphi 0, %s39
      %s43 = sphi 0, %s42
      %s59 = sphi 0, %s43
      %s67 = sphi 0, %s69
      %s70 = sphi 0, %s67
      %s71 = sphi 0, %s70
      %s87 = sphi 0, %s71
      %s91 = sphi 0, %s91
      %s93 = sphi 0, %s91
      %s94 = sphi 0, %s93
      %s108 = sphi 0, %s94
    $region4: #{tpu_custom_call.1} parent=1 // loop_header_branch
      %18 = sbr.rel (%p16) target = $region8
    $region5: #{tpu_custom_call.1} parent=1 // loop_body
      %s20 = ssub.s32 %s15, 1
      %s21 = ssub.s32 %s15, 2
      %s28 = sadd.s32 1, %s23
      %p29 = scmp.ge.s32.totalorder %s28, 1
      %s30 = scalar_select %p29, 0, %s28
      %s31 = sadd.s32 1, %s22
      %s32 = scalar_select %p29, %s31, %s22
      %p33 = scmp.ge.s32.totalorder %s32, 2
      %s34 = scalar_select %p33, 0, %s32
      %s35 = ssub.s32 %s22, %s34
      %s36 = ssub.s32 %s23, %s30
      %s37 = sor.u32 %s35, %s36
      %p38 = scmp.eq.s32.totalorder %s37, 0
      %s40 = sadd.s32 %s39, 1
      %s41 = scalar_select %p38, %s39, %s40
      %p44 = pneg %p38
      %p45 = scmp.eq.s32.totalorder %s15, 1
      %p46 = por %p44, %p45
      %p47 = scmp.ne.s32.totalorder %s39, %s42
      %p48 = scmp.eq.s32.totalorder %s15, 0
      %p49 = por %p47, %p48
      %p50 = scmp.ne.s32.totalorder %s39, %s42
      %p51 = scmp.eq.s32.totalorder %s20, 1
      %p52 = por %p50, %p51
      %p53 = scmp.ne.s32.totalorder %s42, %s43
      %p54 = scmp.eq.s32.totalorder %s20, 0
      %p55 = por %p53, %p54
      %p56 = scmp.ne.s32.totalorder %s42, %s43
      %p57 = scmp.eq.s32.totalorder %s21, 1
      %p58 = por %p56, %p57
      %p60 = scmp.ne.s32.totalorder %s43, %s59
      %p61 = scmp.eq.s32.totalorder %s21, 0
      %p62 = por %p60, %p61
      %s63 = ssub.s32 %s22, %s34
      %s64 = ssub.s32 %s23, %s30
      %s65 = sor.u32 %s63, %s64
      %p66 = scmp.eq.s32.totalorder %s65, 0
      %s68 = sadd.s32 %s67, 1
      %s69 = scalar_select %p66, %s67, %s68
      %p72 = pneg %p66
      %p73 = scmp.eq.s32.totalorder %s15, 1
      %p74 = por %p72, %p73
      %p75 = scmp.ne.s32.totalorder %s67, %s70
      %p76 = scmp.eq.s32.totalorder %s15, 0
      %p77 = por %p75, %p76
      %p78 = scmp.ne.s32.totalorder %s67, %s70
      %p79 = scmp.eq.s32.totalorder %s20, 1
      %p80 = por %p78, %p79
      %p81 = scmp.ne.s32.totalorder %s70, %s71
      %p82 = scmp.eq.s32.totalorder %s20, 0
      %p83 = por %p81, %p82
      %p84 = scmp.ne.s32.totalorder %s70, %s71
      %p85 = scmp.eq.s32.totalorder %s21, 1
      %p86 = por %p84, %p85
      %p88 = scmp.ne.s32.totalorder %s71, %s87
      %p89 = scmp.eq.s32.totalorder %s21, 0
      %p90 = por %p88, %p89
      %s92 = sadd.s32 %s91, 1
      %p95 = scmp.eq.s32.totalorder %s15, 1
      %p96 = scmp.ne.s32.totalorder %s91, %s93
      %p97 = scmp.eq.s32.totalorder %s15, 0
      %p98 = por %p96, %p97
      %p99 = scmp.ne.s32.totalorder %s91, %s93
      %p100 = scmp.eq.s32.totalorder %s20, 1
      %p101 = por %p99, %p100
      %p102 = scmp.ne.s32.totalorder %s93, %s94
      %p103 = scmp.eq.s32.totalorder %s20, 0
      %p104 = por %p102, %p103
      %p105 = scmp.ne.s32.totalorder %s93, %s94
      %p106 = scmp.eq.s32.totalorder %s21, 1
      %p107 = por %p105, %p106
      %p109 = scmp.ne.s32.totalorder %s94, %s108
      %p110 = scmp.eq.s32.totalorder %s21, 0
      %p111 = por %p109, %p110
      %p112 = scmp.le.s32.totalorder 1, %s15
      %p113 = scmp.lt.s32.totalorder %s15, 3
      %p114 = pnand %p112, %p113
      %p115 = pneg %p114
      // Predicated region
      $region9: #{tpu_custom_call.1} parent=5 // pred_check
        _
      $region10: #{tpu_custom_call.1} parent=5 // pred_check_branch
        %117 = sbr.rel (%p114) target = $region12
      $region11: #{tpu_custom_call.1} parent=5 // pred_region
        %s118 = ssub.s32 %s15, 1
      $region12: #{tpu_custom_call.1} parent=5 // pred_fallthru
        _
      %p119 = scmp.lt.s32.totalorder %s15, 2
      // Predicated region
      $region13: #{tpu_custom_call.1} parent=5 // pred_check
        %p120 = pneg %p119
      $region14: #{tpu_custom_call.1} parent=5 // pred_check_branch
        %122 = sbr.rel (%p120) target = $region16
      $region15: #{tpu_custom_call.1} parent=5 // pred_region
        // Predicated region
        $region17: #{tpu_custom_call.1} parent=15 // pred_check
          %p123 = pneg %p49
        $region18: #{tpu_custom_call.1} parent=15 // pred_check_branch
          %125 = sbr.rel (%p123) target = $region20
        $region19: #{tpu_custom_call.1} parent=15 // pred_region
          %s126 = sand.u32 %s39, 1
          %s127 = scalar_lea.sflag [#allocation5], %s126
          %s128 = sand.u32 %s39, 1
          %s129 = smul.addr %s128, 2
          %s130 = scalar_lea.vmem [#allocation4], %s129
          %s131 = smul.u32 2, %s23
          %s133 = ssub.s32 32, 32
          %134 = vsyncadd %s127, %s133
          %s135 = smul.addr %s22, 2
          %s136 = sadd.s32 %s131, %s135
          %s137 = smul.addr %s136, 16
          %s138 = scalar_lea.hbm %s0, %s137
          %s140 = sshll.u32 %s130, 4
          %s141 = int_to_ptr.vmem [resolvable:$true] %s140
          %143 = dma.hbm_to_vmem [thread:$0]  %s138, 32, %s141, %s127
        $region20: #{tpu_custom_call.1} parent=15 // pred_fallthru
          _
        // Predicated region
        $region21: #{tpu_custom_call.1} parent=15 // pred_check
          %p144 = pneg %p77
        $region22: #{tpu_custom_call.1} parent=15 // pred_check_branch
          %146 = sbr.rel (%p144) target = $region24
        $region23: #{tpu_custom_call.1} parent=15 // pred_region
          %s147 = sand.u32 %s67, 1
          %s148 = scalar_lea.sflag [#allocation8], %s147
          %s149 = sand.u32 %s67, 1
          %s150 = smul.addr %s149, 8
          %s151 = scalar_lea.vmem [#allocation7], %s150
          %s152 = smul.u32 2, %s23
          %s154 = ssub.s32 128, 128
          %155 = vsyncadd %s148, %s154
          %s156 = smul.addr %s22, 2
          %s157 = sadd.s32 %s152, %s156
          %s158 = smul.addr %s157, 64
          %s159 = scalar_lea.hbm %s1, %s158
          %s161 = sshll.u32 %s151, 4
          %s162 = int_to_ptr.vmem [resolvable:$true] %s161
          %164 = dma.hbm_to_vmem [thread:$0]  %s159, 128, %s162, %s148
        $region24: #{tpu_custom_call.1} parent=15 // pred_fallthru
          _
      $region16: #{tpu_custom_call.1} parent=5 // pred_fallthru
        _
      %p165 = scmp.le.s32.totalorder 1, %s15
      %p166 = scmp.lt.s32.totalorder %s15, 3
      %p167 = pnand %p165, %p166
      %p168 = pneg %p167
      // Predicated region
      $region25: #{tpu_custom_call.1} parent=5 // pred_check
        _
      $region26: #{tpu_custom_call.1} parent=5 // pred_check_branch
        %170 = sbr.rel (%p167) target = $region28
      $region27: #{tpu_custom_call.1} parent=5 // pred_region
        %s171 = ssub.s32 %s15, 1
        %s172 = sand.u32 %s42, 1
        %s173 = scalar_lea.sflag [#allocation5], %s172
        %s174 = sand.u32 %s42, 1
        %s175 = smul.addr %s174, 2
        %s176 = scalar_lea.vmem [#allocation4], %s175
        // Predicated region
        $region29: #{tpu_custom_call.1} parent=27 // pred_check
          %p177 = pneg %p55
        $region30: #{tpu_custom_call.1} parent=27 // pred_check_branch
          %179 = sbr.rel (%p177) target = $region32
        $region31: #{tpu_custom_call.1} parent=27 // pred_region
          %180 = dma.done %s173, 32
        $region32: #{tpu_custom_call.1} parent=27 // pred_fallthru
          _
        %s181 = sand.u32 %s70, 1
        %s182 = scalar_lea.sflag [#allocation8], %s181
        %s183 = sand.u32 %s70, 1
        %s184 = smul.addr %s183, 8
        %s185 = scalar_lea.vmem [#allocation7], %s184
        // Predicated region
        $region33: #{tpu_custom_call.1} parent=27 // pred_check
          %p186 = pneg %p83
        $region34: #{tpu_custom_call.1} parent=27 // pred_check_branch
          %188 = sbr.rel (%p186) target = $region36
        $region35: #{tpu_custom_call.1} parent=27 // pred_region
          %189 = dma.done %s182, 128
        $region36: #{tpu_custom_call.1} parent=27 // pred_fallthru
          _
        %s190 = sand.u32 %s42, 1
        %s191 = scalar_lea.sflag [#allocation5], %s190
        %s192 = sand.u32 %s42, 1
        %s193 = smul.addr %s192, 2
        %s194 = scalar_lea.vmem [#allocation4], %s193
        %p195 = pneg %p55
        %p196 = pneg %p52
        %s197 = sand.u32 %s70, 1
        %s198 = scalar_lea.sflag [#allocation8], %s197
        %s199 = sand.u32 %s70, 1
        %s200 = smul.addr %s199, 8
        %s201 = scalar_lea.vmem [#allocation7], %s200
        %p202 = pneg %p83
        %p203 = pneg %p80
        %p204 = pneg %p104
        %p205 = pneg %p101
        %s206 = smul.u32 2, %s25
        %s207 = smul.u32 2, %s25
        %p208 = scmp.eq.s32.totalorder %s24, 0
        %p209 = scmp.eq.s32.totalorder %s25, 0
        %p210 = pnand %p208, %p209
        %p211 = pneg %p210
        // Predicated region
        $region37: #{tpu_custom_call.1} parent=27 // pred_check
          _
        $region38: #{tpu_custom_call.1} parent=27 // pred_check_branch
          %213 = sbr.rel (%p210) target = $region40
        $region39: #{tpu_custom_call.1} parent=27 // pred_region
          %vm214 = vcmask 3072
          %215 = vst.msk [vmem:[#allocation2] sm:$0xf] %vm214, 0.0
          %216 = vst.msk [vmem:[#allocation3] sm:$0xf] %vm214, 0.0
        $region40: #{tpu_custom_call.1} parent=27 // pred_fallthru
          _
        %v217 = vld [vmem:[%s185] sm:$0xff]
        %v218 = vld [vmem:[%s176] sm:$0x3]
        %v219 = vlaneseq
        %v220 = vand.u32 %v219, 127
        %v221 = vadd.s32 %v220, 128
        %s222 = smul.u32 %s25, 256
        %v223 = vstv %s222
        %v224 = vadd.s32 %v220, %v223
        %v225 = vadd.s32 %v221, %v223
        %vm226 = vcmp.lt.s32.totalorder %v224, 256
        %vm227 = vcmp.lt.s32.totalorder %v225, 256
        %v228 = vsel %vm226, 1, 0
        %v229 = vsel %vm227, 1, 0
        %v230 = vcvt.s32.f32 %v228
        %v231 = vcvt.s32.f32 %v229
        %vm232 = vcmp.eq.s32.totalorder %v228, 1
        %vm233 = vcmp.eq.s32.totalorder %v229, 1
        %v235 = vcombine.high %v217, %v217
        %v237 = vsel %vm232, %v217, 0.0
        %v238 = vsel %vm233, %v235, 0.0
        %vm239 = vcmask 1043456
        %v240 = vsel %vm239, %v237, -inf
        %v241 = vrot.slane %v240, 4
        %v242 = vmax.f32 %v240, %v241
        %v243 = vrot.slane %v242, 2
        %v244 = vmax.f32 %v242, %v243
        %v245 = vrot.slane %v244, 1
        %v246 = vmax.f32 %v244, %v245
        %v247 = vsel %vm239, %v238, -inf
        %v248 = vrot.slane %v247, 4
        %v249 = vmax.f32 %v247, %v248
        %v250 = vrot.slane %v249, 2
        %v251 = vmax.f32 %v249, %v250
        %v252 = vrot.slane %v251, 1
        %v253 = vmax.f32 %v251, %v252
        %v254 = vsub.f32 %v237, %v246
        %v255 = vsub.f32 %v238, %v253
        %v256 = vmul.f32 %v254, 1.442695
        %v257 = vpow.pop %v256
        %v258 = vmul.f32 %v255, 1.442695
        %v259 = vpow.pop %v258
        %v260 = vsel %vm239, %v257, 0.0
        %v261 = vrot.slane %v260, 4
        %v262 = vadd.f32 %v260, %v261
        %v263 = vrot.slane %v262, 2
        %v264 = vadd.f32 %v262, %v263
        %v265 = vrot.slane %v264, 1
        %v266 = vadd.f32 %v264, %v265
        %v267 = vsel %vm239, %v259, 0.0
        %v268 = vrot.slane %v267, 4
        %v269 = vadd.f32 %v267, %v268
        %v270 = vrot.slane %v269, 2
        %v271 = vadd.f32 %v269, %v270
        %v272 = vrot.slane %v271, 1
        %v273 = vadd.f32 %v271, %v272
        %v274 = vrcp.pop %v266
        %v275 = vmul.f32 %v257, %v274
        %v276 = vrcp.pop %v273
        %v277 = vmul.f32 %v259, %v276
        %v278 = vmul.f32 %v275, %v230
        %v279 = vmul.f32 %v277, %v231
        %v280 = vlaneseq
        %v281 = vshrl.u32 %v280, 7
        %v282 = vlaneseq
        %v283 = vshrl.u32 %v282, 7
        %v284 = vsub.s32 0, %v283
        %v285 = vrot.slane %v218, %v284
        %v286 = vlaneseq
        %v287 = vshrl.u32 %v286, 7
        %v288 = vsub.s32 1, %v287
        %v289 = vrot.slane %v218, %v288
        %vm290 = vcmp.eq.s32.totalorder %v285, %v281
        %vm291 = vcmp.eq.s32.totalorder %v289, %v281
        %v292 = vsel %vm290, 1, 0
        %v293 = vsel %vm291, 1, 0
        %v294 = vcvt.s32.f32 %v292
        %v295 = vcvt.s32.f32 %v293
        %v296 = vmul.f32 %v294, %v230
        %v297 = vmul.f32 %v295, %v231
        %v298 = vld [vmem:[#allocation2] sm:$0xf]
        %v299 = vmul.f32 %v278, %v296
        %v300 = vmul.f32 %v279, %v297
        %v301 = vsel %vm239, %v299, 0.0
        %v302 = vsel %vm239, %v300, 0.0
        %v303 = vadd.f32 %v301, %v302
        %304 = vadd.xlane.f32.xlu0 %v303
        %v305 = vpop.xlane.xlu0 %304
        %v306 = vadd.f32 %v298, %v305
        %vm307 = vcmask 3072
        %308 = vst.msk [vmem:[#allocation2] sm:$0xf] %vm307, %v306
        %v309 = vld [vmem:[#allocation3] sm:$0xf]
        %v310 = vsel %vm239, %v278, 0.0
        %v311 = vsel %vm239, %v279, 0.0
        %v312 = vadd.f32 %v310, %v311
        %313 = vadd.xlane.f32.xlu0 %v312
        %v314 = vpop.xlane.xlu0 %313
        %v315 = vsel %vm239, %v296, 0.0
        %v316 = vsel %vm239, %v297, 0.0
        %v317 = vadd.f32 %v315, %v316
        %318 = vadd.xlane.f32.xlu0 %v317
        %v319 = vpop.xlane.xlu0 %318
        %v320 = vadd.f32 %v314, %v319
        %v321 = vadd.f32 %v309, %v320
        %322 = vst.msk [vmem:[#allocation3] sm:$0xf] %vm307, %v321
        %p323 = scmp.eq.s32.totalorder %s24, 1
        %p324 = pnand %p323, %p209
        %p325 = pneg %p324
        // Predicated region
        $region41: #{tpu_custom_call.1} parent=27 // pred_check
          _
        $region42: #{tpu_custom_call.1} parent=27 // pred_check_branch
          %327 = sbr.rel (%p324) target = $region44
        $region43: #{tpu_custom_call.1} parent=27 // pred_region
          %v328 = vld [vmem:[#allocation2] sm:$0xf]
          %v329 = vmul.f32 %v328, 2.0
          %v330 = vadd.f32 %v329, 1e-08
          %v331 = vld [vmem:[#allocation3] sm:$0xf]
          %v332 = vadd.f32 %v331, 1e-08
          %v333 = vrcp.pop %v332
          %v334 = vmul.f32 %v330, %v333
          %v335 = vsub.f32 1.0, %v334
          %v336 = vsel %vm307, %v335, 0.0
          %v337 = vrot.slane %v336, 4
          %v338 = vadd.f32 %v336, %v337
          %v339 = vrot.slane %v338, 2
          %v340 = vadd.f32 %v338, %v339
          %v341 = vrot.slane %v340, 1
          %v342 = vadd.f32 %v340, %v341
          %v343 = vrcp.pop 4.0
          %v344 = vmul.f32 %v342, %v343
          %vm345 = vcmask 0
          %346 = vst.msk [vmem:[#allocation9] sm:$0x1] %vm345, %v344
        $region44: #{tpu_custom_call.1} parent=27 // pred_fallthru
          _
        // Predicated region
        $region45: #{tpu_custom_call.1} parent=27 // pred_check
          %p347 = pneg %p101
        $region46: #{tpu_custom_call.1} parent=27 // pred_check_branch
          %349 = sbr.rel (%p347) target = $region48
        $region47: #{tpu_custom_call.1} parent=27 // pred_region
          %s351 = ssub.s32 16, 16
          %352 = vsyncadd [#allocation6], %s351
          %s354 = sshll.u32 [#allocation9], 4
          %s355 = int_to_ptr.vmem [resolvable:$true] %s354
          %357 = dma.vmem_to_hbm [thread:$0]  %s355, 16, %s2, [#allocation6]
        $region48: #{tpu_custom_call.1} parent=27 // pred_fallthru
          _
        // Predicated region
        $region49: #{tpu_custom_call.1} parent=27 // pred_check
          %p358 = pneg %p101
        $region50: #{tpu_custom_call.1} parent=27 // pred_check_branch
          %360 = sbr.rel (%p358) target = $region52
        $region51: #{tpu_custom_call.1} parent=27 // pred_region
          %361 = dma.done [#allocation6], 16
        $region52: #{tpu_custom_call.1} parent=27 // pred_fallthru
          _
      $region28: #{tpu_custom_call.1} parent=5 // pred_fallthru
        _
      %p362 = scmp.le.s32.totalorder 2, %s15
      // Predicated region
      $region53: #{tpu_custom_call.1} parent=5 // pred_check
        %p363 = pneg %p362
      $region54: #{tpu_custom_call.1} parent=5 // pred_check_branch
        %365 = sbr.rel (%p363) target = $region56
      $region55: #{tpu_custom_call.1} parent=5 // pred_region
        %s366 = ssub.s32 %s15, 2
      $region56: #{tpu_custom_call.1} parent=5 // pred_fallthru
        _
    $region6: #{tpu_custom_call.1} parent=1 // loop_footer
      %s19 = sadd.s32 1, %s15
    $region7: #{tpu_custom_call.1} parent=1 // loop_footer_branch
      %14 = sbr.rel target = $region3
    $region8: #{tpu_custom_call.1} parent=1 // loop_exit
      _
    %367 = vsyncpa [#allocation5], 1
    %s368 = scalar_lea.sflag [#allocation5], 1
    %369 = vsyncpa %s368, 1
    %370 = vsyncpa [#allocation8], 1
    %s371 = scalar_lea.sflag [#allocation8], 1
    %372 = vsyncpa %s371, 1
    %373 = vsyncpa [#allocation6], 1
    %s374 = scalar_lea.sflag [#allocation6], 1
    %375 = vsyncpa %s374, 1

</llo_original>
